<compile_context>
chip_gen: v6e
topology: v6e:2x2x1
jax: 0.10.0
libtpu: 0.0.40
codegen_flags: <defaults>
</compile_context>

<pallas_src>
import functools

import jax
import jax.numpy as jnp
from jax.experimental import pallas as pl
from jax.experimental.pallas import tpu as pltpu


# Largest lane tile we allow: double-buffered VMEM footprint ~ 256*tile_n bytes
# (4 streams x 2 buffers x 8-sublane padding x 4B) ~= 8 MiB at 32768, which
# fits every generation's default scoped VMEM (v5e: 16 MiB).
_MAX_TILE_N = 32768
_SMALL_N_THRESHOLD = 4096


def _tensorcores_per_chip():
    """2 on v7x (two TensorCores share the chip's HBM), else 1."""
    try:
        kind = jax.devices()[0].device_kind.lower()
    except Exception:  # pragma: no cover - defensive
        return 1
    return 2 if ("7x" in kind or "v7" in kind) else 1


def _hand_type_loss_kernel(out_ref, gt_ref, valid_ref, loss_ref, *, inv_c):
    # out_ref / gt_ref: (C, TILE_N)   valid_ref / loss_ref: (1, TILE_N)
    x = out_ref[...].astype(jnp.float32)
    y = gt_ref[...].astype(jnp.float32)
    v = valid_ref[...].astype(jnp.float32)

    # Numerically stable binary_cross_entropy_with_logits (reduction='none'):
    #   l = max(x, 0) - x*y + log1p(exp(-|x|))
    per_elem = jnp.maximum(x, 0.0) - x * y + jnp.log1p(jnp.exp(-jnp.abs(x)))

    # mean over the (small) class axis = sum over sublanes * 1/C, then mask.
    loss_ref[...] = jnp.sum(per_elem, axis=0, keepdims=True) * inv_c * v


def _fused_reference(hand_type_out, hand_type_gt, hand_type_valid):
    """Fused XLA path (also the numerical reference)."""
    x = hand_type_out.astype(jnp.float32)
    y = hand_type_gt.astype(jnp.float32)
    per_elem = jnp.maximum(x, 0.0) - x * y + jnp.log1p(jnp.exp(-jnp.abs(x)))
    return per_elem.mean(axis=1) * hand_type_valid.reshape(-1).astype(jnp.float32)


def hand_type_loss(hand_type_out, hand_type_gt, hand_type_valid, *,
                   tile_n=_MAX_TILE_N, use_pallas=None):
    """hand_type_out/gt: (N, C); hand_type_valid: (N,) -> (N,) f32 loss."""
    n, c = hand_type_out.shape

    # Small-N fast path: kernel dispatch + layout plumbing outweighs the work.
    if use_pallas is None:
        use_pallas = n > _SMALL_N_THRESHOLD
    if not use_pallas:
        return _fused_reference(hand_type_out, hand_type_gt, hand_type_valid)

    # ---- tile-size selection -------------------------------------------------
    n_pad128 = pl.cdiv(n, 128) * 128
    tile_n = max(128, min(int(tile_n), _MAX_TILE_N, n_pad128))
    tile_n = (tile_n // 128) * 128

    # v7x: keep the "parallel" grid at >= 2 steps so both TensorCores (and the
    # HBM bandwidth feeding them) are used.  v5e/v6e: as few steps as possible.
    cores = _tensorcores_per_chip()
    if cores > 1 and n_pad128 >= cores * 128:
        per_core = ((n_pad128 // cores) // 128) * 128
        tile_n = min(tile_n, per_core)

    n_pad = pl.cdiv(n, tile_n) * tile_n
    pad = n_pad - n
    grid = (n_pad // tile_n,)

    # ---- lane-dense layout (batch on lanes), all streams in source dtype -----
    # Single fused transpose+pad layout pass per logits array; valid is padded
    # in its source dtype (bool/int8/bf16/f32) and cast in-kernel.
    out_t = jnp.pad(hand_type_out.T, ((0, 0), (0, pad)))                # (C, N_pad)
    gt_t = jnp.pad(hand_type_gt.T, ((0, 0), (0, pad)))                  # (C, N_pad)
    valid_t = jnp.pad(hand_type_valid.reshape(1, n), ((0, 0), (0, pad)))  # (1, N_pad)

    kernel = functools.partial(_hand_type_loss_kernel, inv_c=1.0 / float(c))

    # Advisory cost estimate using the actual dtypes (mem-bound picture).
    bytes_accessed = (
        n * c * (hand_type_out.dtype.itemsize + hand_type_gt.dtype.itemsize)
        + n * hand_type_valid.dtype.itemsize
        + n * 4  # f32 output
    )
    cost = pl.CostEstimate(
        flops=5 * n * c + n,
        transcendentals=2 * n * c,
        bytes_accessed=bytes_accessed,
    )

    loss = pl.pallas_call(
        kernel,
        out_shape=jax.ShapeDtypeStruct((1, n_pad), jnp.float32),
        grid=grid,
        in_specs=[
            pl.BlockSpec((c, tile_n), lambda i: (0, i)),
            pl.BlockSpec((c, tile_n), lambda i: (0, i)),
            pl.BlockSpec((1, tile_n), lambda i: (0, i)),
        ],
        out_specs=pl.BlockSpec((1, tile_n), lambda i: (0, i)),
        compiler_params=pltpu.CompilerParams(
            dimension_semantics=("parallel",),
        ),
        cost_estimate=cost,
    )(out_t, gt_t, valid_t)

    return loss.reshape(n_pad)[:n]


if __name__ == "__main__":
    key = jax.random.PRNGKey(0)
    k1, k2, k3 = jax.random.split(key, 3)

    # Small shapes consistent with the module: batch of 8, 2 hand-type classes.
    N, C = 8, 2
    hand_type_out = jax.random.normal(k1, (N, C), dtype=jnp.float32) * 2.0
    hand_type_gt = (jax.random.uniform(k2, (N, C)) > 0.5).astype(jnp.float32)
    hand_type_valid = (jax.random.uniform(k3, (N,)) > 0.3).astype(jnp.float32)

    ref = _fused_reference(hand_type_out, hand_type_gt, hand_type_valid)

    # Force the Pallas kernel path (auto mode would use the fused-XLA fast path
    # at this batch size).
    out = hand_type_loss(hand_type_out, hand_type_gt, hand_type_valid,
                         use_pallas=True)
    out = jax.block_until_ready(out)
    assert out.shape == (N,)
    assert jnp.allclose(out, ref, atol=1e-5, rtol=1e-5)

    # Auto mode (small-N fast path) must match too.
    out_auto = jax.block_until_ready(
        hand_type_loss(hand_type_out, hand_type_gt, hand_type_valid))
    assert out_auto.shape == (N,)
    assert jnp.allclose(out_auto, ref, atol=1e-5, rtol=1e-5)

    # Larger, multi-tile, non-multiple-of-128 batch exercising the grid path.
    k4, k5, k6 = jax.random.split(jax.random.PRNGKey(1), 3)
    N2 = 1000
    ho = jax.random.normal(k4, (N2, C), dtype=jnp.float32) * 3.0
    hg = (jax.random.uniform(k5, (N2, C)) > 0.5).astype(jnp.float32)
    hv = (jax.random.uniform(k6, (N2,)) > 0.3).astype(jnp.float32)
    out2 = jax.block_until_ready(
        hand_type_loss(ho, hg, hv, tile_n=256, use_pallas=True))
    assert out2.shape == (N2,)
    assert jnp.allclose(out2, _fused_reference(ho, hg, hv), atol=1e-5, rtol=1e-5)

    # bf16 logits / bool valid: source-dtype streams, in-kernel f32 cast.
    ho_bf16 = ho.astype(jnp.bfloat16)
    hv_bool = hv > 0.5
    out3 = jax.block_until_ready(
        hand_type_loss(ho_bf16, hg, hv_bool, use_pallas=True))
    ref3 = _fused_reference(ho_bf16, hg, hv_bool)
    assert jnp.allclose(out3, ref3, atol=1e-3, rtol=1e-3)

    print("KERNEL_OK")
</pallas_src>

<mosaic_0001>
module attributes {stable_mosaic.version = 11 : i64} {
  func.func @_hand_type_loss_kernel(%arg0: i32, %arg1: memref<2x128xf32, #tpu.memory_space<vmem>>, %arg2: memref<2x128xf32, #tpu.memory_space<vmem>>, %arg3: memref<1x128xf32, #tpu.memory_space<vmem>>, %arg4: memref<1x128xf32, #tpu.memory_space<vmem>>) attributes {dimension_semantics = [#tpu.dimension_semantics<parallel>], iteration_bounds = array<i64: 1>, scalar_prefetch = 0 : i64, scratch_operands = 0 : i64, tpu.core_type = #tpu.core_type<tc>, window_params = [{transform_indices = @transform_0, window_bounds = array<i64: 2, 128>}, {transform_indices = @transform_1, window_bounds = array<i64: 2, 128>}, {transform_indices = @transform_2, window_bounds = array<i64: 1, 128>}, {transform_indices = @transform_3, window_bounds = array<i64: 1, 128>}]} {
    %c0 = arith.constant 0 : index
    %c0_0 = arith.constant 0 : index
    %0 = vector.load %arg1[%c0, %c0_0] : memref<2x128xf32, #tpu.memory_space<vmem>>, vector<2x128xf32>
    %c0_1 = arith.constant 0 : index
    %c0_2 = arith.constant 0 : index
    %1 = vector.load %arg2[%c0_1, %c0_2] : memref<2x128xf32, #tpu.memory_space<vmem>>, vector<2x128xf32>
    %c0_3 = arith.constant 0 : index
    %c0_4 = arith.constant 0 : index
    %2 = vector.load %arg3[%c0_3, %c0_4] : memref<1x128xf32, #tpu.memory_space<vmem>>, vector<1x128xf32>
    %cst = arith.constant 0.000000e+00 : f32
    %3 = vector.broadcast %cst : f32 to vector<2x128xf32>
    %4 = arith.maximumf %0, %3 : vector<2x128xf32>
    %5 = arith.mulf %0, %1 : vector<2x128xf32>
    %6 = arith.subf %4, %5 : vector<2x128xf32>
    %7 = math.absf %0 : vector<2x128xf32>
    %cst_5 = arith.constant 0.000000e+00 : f32
    %8 = vector.broadcast %cst_5 : f32 to vector<2x128xf32>
    %9 = arith.subf %8, %7 : vector<2x128xf32>
    %10 = math.exp %9 : vector<2x128xf32>
    %11 = math.log1p %10 : vector<2x128xf32>
    %12 = arith.addf %6, %11 : vector<2x128xf32>
    %cst_6 = arith.constant dense<0.000000e+00> : vector<128xf32>
    %13 = vector.multi_reduction <add>, %12, %cst_6 [0] : vector<2x128xf32> to vector<128xf32>
    %14 = vector.shape_cast %13 : vector<128xf32> to vector<1x128xf32>
    %cst_7 = arith.constant 5.000000e-01 : f32
    %15 = vector.broadcast %cst_7 : f32 to vector<1x128xf32>
    %16 = arith.mulf %14, %15 : vector<1x128xf32>
    %17 = arith.mulf %16, %2 : vector<1x128xf32>
    %c0_8 = arith.constant 0 : index
    %c0_9 = arith.constant 0 : index
    %18 = vector.load %arg4[%c0_8, %c0_9] : memref<1x128xf32, #tpu.memory_space<vmem>>, vector<1x128xf32>
    tpu.vector_store %arg4[%c0_8, %c0_9], %17 {strides = array<i32>} : memref<1x128xf32, #tpu.memory_space<vmem>>, vector<1x128xf32>,
    return
  }
  func.func @transform_0(%arg0: i32) -> (i32, i32) {
    %c0_i32 = arith.constant 0 : i32
    %c0_i32_0 = arith.constant 0 : i32
    return %c0_i32, %arg0 : i32, i32
  }
  func.func @transform_1(%arg0: i32) -> (i32, i32) {
    %c0_i32 = arith.constant 0 : i32
    %c0_i32_0 = arith.constant 0 : i32
    return %c0_i32, %arg0 : i32, i32
  }
  func.func @transform_2(%arg0: i32) -> (i32, i32) {
    %c0_i32 = arith.constant 0 : i32
    %c0_i32_0 = arith.constant 0 : i32
    return %c0_i32, %arg0 : i32, i32
  }
  func.func @transform_3(%arg0: i32) -> (i32, i32) {
    %c0_i32 = arith.constant 0 : i32
    %c0_i32_0 = arith.constant 0 : i32
    return %c0_i32, %arg0 : i32, i32
  }
}

</mosaic_0001>

<llo_original>
// kernel: tpu_custom_call.1
$region0: #{tpu_custom_call.1}
  #allocation0 [shape = 'u32[]', space=smem, size = 0x4, offset = 0x4, fixed_abs, tag = 'smem constant byte address 0x4 - core index']
  #allocation1 [shape = 'u32[144,128]{1,0:T(1,128)}', space=vmem, size = 0x12000, scoped, tag = 'internal scratch']
  %s0 = inlined_call_operand.hbm [shape: f32[2,128], index: 0, kind: input, shape index: {}]
  %s1 = inlined_call_operand.hbm [shape: f32[2,128], index: 1, kind: input, shape index: {}]
  %s2 = inlined_call_operand.vmem [shape: f32[1,128], index: 2, kind: input, shape index: {}]
  %s3 = inlined_call_operand.hbm [shape: f32[1,128], index: 3, kind: output, shape index: {}]
  %s4 = sld [smem:[#allocation0]]
  $region30: #{tpu_custom_call.1} parent=0
    _
  %s6 = ssub.s32 1, %s4
  %s7 = scalar_select 0, %s6, %s4
  $region1: #{tpu_custom_call.1} parent=0
    #allocation2 [shape = 'u8[1024]{0}', space=vmem, size = 0x400, scoped, tag = 'input window, operand 0, single buffered']
    #allocation3 [shape = 's32[1]{0}', space=sflag, size = 0x4, scoped, tag = 'scoped memory for tpu_custom_call.1']
    #allocation4 [shape = 's32[1]{0}', space=sflag, size = 0x4, scoped, tag = 'scoped memory for tpu_custom_call.1']
    #allocation5 [shape = 'u8[1024]{0}', space=vmem, size = 0x400, scoped, tag = 'input window, operand 1, single buffered']
    #allocation6 [shape = 's32[1]{0}', space=sflag, size = 0x4, scoped, tag = 'scoped memory for tpu_custom_call.1']
    #allocation7 [shape = 'u8[512]{0}', space=vmem, size = 0x400, scoped, tag = 'output window, operand 0, single buffered']
    %8 = vsyncpa [#allocation3], 0
    %9 = vsyncpa [#allocation6], 0
    %10 = vsyncpa [#allocation4], 0
    // Predicated region
    $region2: #{tpu_custom_call.1} parent=1 // pred_check
      _
    $region3: #{tpu_custom_call.1} parent=1 // pred_check_branch
      %12 = sbr.rel (0) target = $region5
    $region4: #{tpu_custom_call.1} parent=1 // pred_region
      %s14 = ssub.s32 32, 32
      %15 = vsyncadd [#allocation3], %s14
      %s17 = sshll.u32 [#allocation2], 4
      %s18 = int_to_ptr.vmem [resolvable:$true] %s17
      %20 = dma.hbm_to_vmem [thread:$0]  %s0, 32, %s18, [#allocation3]
    $region5: #{tpu_custom_call.1} parent=1 // pred_fallthru
      _
    // Predicated region
    $region6: #{tpu_custom_call.1} parent=1 // pred_check
      _
    $region7: #{tpu_custom_call.1} parent=1 // pred_check_branch
      %22 = sbr.rel (0) target = $region9
    $region8: #{tpu_custom_call.1} parent=1 // pred_region
      %s24 = ssub.s32 32, 32
      %25 = vsyncadd [#allocation6], %s24
      %s27 = sshll.u32 [#allocation5], 4
      %s28 = int_to_ptr.vmem [resolvable:$true] %s27
      %30 = dma.hbm_to_vmem [thread:$0]  %s1, 32, %s28, [#allocation6]
    $region9: #{tpu_custom_call.1} parent=1 // pred_fallthru
      _
    // Predicated region
    $region10: #{tpu_custom_call.1} parent=1 // pred_check
      _
    $region11: #{tpu_custom_call.1} parent=1 // pred_check_branch
      %32 = sbr.rel (0) target = $region13
    $region12: #{tpu_custom_call.1} parent=1 // pred_region
      _
    $region13: #{tpu_custom_call.1} parent=1 // pred_fallthru
      _
    // Predicated region
    $region14: #{tpu_custom_call.1} parent=1 // pred_check
      _
    $region15: #{tpu_custom_call.1} parent=1 // pred_check_branch
      %34 = sbr.rel (0) target = $region17
    $region16: #{tpu_custom_call.1} parent=1 // pred_region
      %35 = dma.done [#allocation3], 32
    $region17: #{tpu_custom_call.1} parent=1 // pred_fallthru
      _
    // Predicated region
    $region18: #{tpu_custom_call.1} parent=1 // pred_check
      _
    $region19: #{tpu_custom_call.1} parent=1 // pred_check_branch
      %37 = sbr.rel (0) target = $region21
    $region20: #{tpu_custom_call.1} parent=1 // pred_region
      %38 = dma.done [#allocation6], 32
    $region21: #{tpu_custom_call.1} parent=1 // pred_fallthru
      _
    %v39 = vld [vmem:[#allocation2] sm:$0x3]
    %v40 = vld [vmem:[#allocation5] sm:$0x3]
    %v41 = vld [vmem:[%s2] sm:$0x1]
    %v42 = vmax.f32 %v39, 0.0
    %v43 = vmul.f32 %v39, %v40
    %v44 = vsub.f32 %v42, %v43
    %v45 = vand.u32 2147483647, %v39
    %v46 = vsub.f32 0.0, %v45
    %v47 = vmul.f32 %v46, 1.442695
    %v48 = vpow.pop %v47
    %v49 = vadd.f32 %v48, 1.0
    %v50 = vlog2.pop %v49
    %v51 = vmul.f32 %v50, 0.6931472
    %v52 = vmul.f32 -0.5, %v48
    %v53 = vadd.f32 %v52, 1.0
    %v54 = vmul.f32 %v53, %v48
    %v55 = vand.u32 2147483647, %v48
    %vm56 = vcmp.lt.f32.partialorder %v55, 0.0004427343
    %v57 = vsel %vm56, %v54, %v51
    %v58 = vadd.f32 %v44, %v57
    %vm59 = vcmask 1041408
    %v60 = vsel %vm59, %v58, 0.0
    %v61 = vrot.slane %v60, 4
    %v62 = vadd.f32 %v60, %v61
    %v63 = vrot.slane %v62, 2
    %v64 = vadd.f32 %v62, %v63
    %v65 = vrot.slane %v64, 1
    %v66 = vadd.f32 %v64, %v65
    %v67 = vmul.f32 %v66, 0.5
    %v68 = vmul.f32 %v67, %v41
    %69 = vst [vmem:[#allocation7] sm:$0x1] %v68
    // Predicated region
    $region22: #{tpu_custom_call.1} parent=1 // pred_check
      _
    $region23: #{tpu_custom_call.1} parent=1 // pred_check_branch
      %71 = sbr.rel (0) target = $region25
    $region24: #{tpu_custom_call.1} parent=1 // pred_region
      %s73 = ssub.s32 16, 16
      %74 = vsyncadd [#allocation4], %s73
      %s76 = sshll.u32 [#allocation7], 4
      %s77 = int_to_ptr.vmem [resolvable:$true] %s76
      %79 = dma.vmem_to_hbm [thread:$0]  %s77, 16, %s3, [#allocation4]
    $region25: #{tpu_custom_call.1} parent=1 // pred_fallthru
      _
    // Predicated region
    $region26: #{tpu_custom_call.1} parent=1 // pred_check
      _
    $region27: #{tpu_custom_call.1} parent=1 // pred_check_branch
      %81 = sbr.rel (0) target = $region29
    $region28: #{tpu_custom_call.1} parent=1 // pred_region
      %82 = dma.done [#allocation4], 16
    $region29: #{tpu_custom_call.1} parent=1 // pred_fallthru
      _
    %83 = vsyncpa [#allocation3], 1
    %84 = vsyncpa [#allocation6], 1
    %85 = vsyncpa [#allocation4], 1

</llo_original>
